<compile_context>
chip_gen: v6e
topology: v6e:2x2x1
jax: 0.10.0
libtpu: 0.0.40
codegen_flags: <defaults>
</compile_context>

<pallas_src>
import functools

import jax
import jax.numpy as jnp
from jax.experimental import pallas as pl
from jax.experimental.pallas import tpu as pltpu


def _round_up(x, m):
    return ((x + m - 1) // m) * m


# --------------------------------------------------------------------------- #
# Kernel
# --------------------------------------------------------------------------- #
def _make_double_q_kernel(hidden_depth):
    """Kernel computing both Q-heads in one fused (block-diagonal) MLP pass.

    Ref layout (refs only present when that layer group exists):
      obs_ref (tile, obs_dim), act_ref (tile, act_dim),
      w0o_ref (obs_dim, HP),   w0a_ref (act_dim, HP),
      [wh_ref (depth-1, HP, HP)]      -- hidden block-diag layers (depth >= 2)
      [wf_ref (HP, 128)]              -- final layer              (depth >= 1)
      bh_ref  (max(depth,1), HP)      -- layer-0 + hidden biases
      [bf_ref (1, 128)]               -- final bias               (depth >= 1)
      out_ref (tile, OUTP)            -- q1 in col 0, q2 in col 1, rest zero.
    """
    n_hidden = max(hidden_depth - 1, 0)

    def kernel(*refs):
        it = iter(refs)
        obs_ref = next(it)
        act_ref = next(it)
        w0o_ref = next(it)
        w0a_ref = next(it)
        wh_ref = next(it) if n_hidden > 0 else None
        wf_ref = next(it) if hidden_depth >= 1 else None
        bh_ref = next(it)
        bf_ref = next(it) if hidden_depth >= 1 else None
        out_ref = next(it)

        w0o = w0o_ref[...]
        w0a = w0a_ref[...]

        # Layer 0 of BOTH heads, split over obs/action (no concat materialized).
        h = (jnp.dot(obs_ref[...].astype(w0o.dtype), w0o,
                     preferred_element_type=jnp.float32)
             + jnp.dot(act_ref[...].astype(w0a.dtype), w0a,
                       preferred_element_type=jnp.float32)
             + bh_ref[0:1, :])

        if hidden_depth == 0:
            # Single Linear(in, 1) per head; no activation.
            out_ref[...] = h.astype(out_ref.dtype)
            return

        # Hidden block-diagonal layers: ReLU then Linear.
        for i in range(n_hidden):
            h = jnp.maximum(h, 0.0)
            w = wh_ref[i]                                   # (HP, HP)
            h = (jnp.dot(h.astype(w.dtype), w, preferred_element_type=jnp.float32)
                 + bh_ref[i + 1:i + 2, :])

        # Final layer: ReLU then narrow (HP, 128) projection; no output ReLU.
        h = jnp.maximum(h, 0.0)
        wf = wf_ref[...]
        out = (jnp.dot(h.astype(wf.dtype), wf, preferred_element_type=jnp.float32)
               + bf_ref[...])
        out_ref[...] = out.astype(out_ref.dtype)            # lane-dense store

    return kernel


# --------------------------------------------------------------------------- #
# Parameter construction / packing
# --------------------------------------------------------------------------- #
def init_mlp_params(key, in_dim, hidden_dim, out_dim, hidden_depth, dtype=jnp.float32):
    """Deterministic synthetic init mirroring util.mlp layer shapes.

    Weights stored as (in, out) (PyTorch nn.Linear is (out, in), pre-transposed
    here); biases as (1, out).
    """
    if hidden_depth == 0:
        dims = [(in_dim, out_dim)]
    else:
        dims = [(in_dim, hidden_dim)]
        dims += [(hidden_dim, hidden_dim)] * (hidden_depth - 1)
        dims += [(hidden_dim, out_dim)]

    params = []
    for (d_in, d_out) in dims:
        key, kw, kb = jax.random.split(key, 3)
        scale = 1.0 / jnp.sqrt(jnp.asarray(d_in, dtype))
        w = (jax.random.normal(kw, (d_in, d_out), dtype) * scale).astype(dtype)
        b = (jax.random.normal(kb, (1, d_out), dtype) * 0.01).astype(dtype)
        params += [w, b]
    return params, key


def pack_double_q_params(q1_params, q2_params, obs_dim, action_dim, hidden_dim,
                         hidden_depth, weight_dtype=jnp.float32):
    """Fuse the two per-head MLPs into block-diagonal, lane-padded slabs.

    Returns (w0_obs, w0_act, w_hidden, w_final, b_hidden, b_final); entries that
    do not exist for the given depth are None.
    Column layout of the fused hidden width (padded to HP, a multiple of 128):
      Q1 occupies columns [0, H), Q2 occupies [H, 2H), the rest is zero.
    Final-layer outputs: q1 at column 0, q2 at column 1 of a 128-lane slab.
    Cross-head blocks are exactly zero, so the heads never leak into each other.
    NOTE: for very wide hidden layers (2*H >> 128) the block-diagonal fusion
    doubles hidden-layer MXU work vs. running heads separately; at typical
    critic widths (H <= 128) fusion is a strict win since the MXU/lane minimum
    is 128 anyway.
    """
    H = hidden_dim
    in_dim = obs_dim + action_dim
    OUTP = 128

    def w(p, i):
        return p[2 * i]

    def b(p, i):
        return p[2 * i + 1]

    if hidden_depth == 0:
        HP = OUTP
        w0_full = jnp.zeros((in_dim, HP), weight_dtype)
        w0_full = w0_full.at[:, 0:1].set(w(q1_params, 0).astype(weight_dtype))
        w0_full = w0_full.at[:, 1:2].set(w(q2_params, 0).astype(weight_dtype))
        b0 = jnp.zeros((1, HP), jnp.float32)
        b0 = b0.at[0, 0].set(b(q1_params, 0)[0, 0].astype(jnp.float32))
        b0 = b0.at[0, 1].set(b(q2_params, 0)[0, 0].astype(jnp.float32))
        return w0_full[:obs_dim], w0_full[obs_dim:], None, None, b0, None

    HP = max(128, _round_up(2 * H, 128))

    # --- layer 0: fused over heads, split over obs / action rows ------------ #
    w0_full = jnp.zeros((in_dim, HP), weight_dtype)
    w0_full = w0_full.at[:, 0:H].set(w(q1_params, 0).astype(weight_dtype))
    w0_full = w0_full.at[:, H:2 * H].set(w(q2_params, 0).astype(weight_dtype))
    w0_obs = w0_full[:obs_dim]
    w0_act = w0_full[obs_dim:]

    biases = []
    b0 = jnp.zeros((HP,), jnp.float32)
    b0 = b0.at[0:H].set(b(q1_params, 0)[0].astype(jnp.float32))
    b0 = b0.at[H:2 * H].set(b(q2_params, 0)[0].astype(jnp.float32))
    biases.append(b0)

    # --- hidden layers 1..depth-1: block-diagonal --------------------------- #
    hidden_ws = []
    for i in range(1, hidden_depth):
        wi = jnp.zeros((HP, HP), weight_dtype)
        wi = wi.at[0:H, 0:H].set(w(q1_params, i).astype(weight_dtype))
        wi = wi.at[H:2 * H, H:2 * H].set(w(q2_params, i).astype(weight_dtype))
        hidden_ws.append(wi)

        bi = jnp.zeros((HP,), jnp.float32)
        bi = bi.at[0:H].set(b(q1_params, i)[0].astype(jnp.float32))
        bi = bi.at[H:2 * H].set(b(q2_params, i)[0].astype(jnp.float32))
        biases.append(bi)

    w_hidden = jnp.stack(hidden_ws, axis=0) if hidden_ws else None  # (depth-1, HP, HP)
    b_hidden = jnp.stack(biases, axis=0)                            # (depth, HP)

    # --- final layer: (HP, 128), q1 -> col 0, q2 -> col 1 -------------------- #
    i_fin = hidden_depth
    w_final = jnp.zeros((HP, OUTP), weight_dtype)
    w_final = w_final.at[0:H, 0:1].set(w(q1_params, i_fin).astype(weight_dtype))
    w_final = w_final.at[H:2 * H, 1:2].set(w(q2_params, i_fin).astype(weight_dtype))
    b_final = jnp.zeros((1, OUTP), jnp.float32)
    b_final = b_final.at[0, 0].set(b(q1_params, i_fin)[0, 0].astype(jnp.float32))
    b_final = b_final.at[0, 1].set(b(q2_params, i_fin)[0, 0].astype(jnp.float32))

    return w0_obs, w0_act, w_hidden, w_final, b_hidden, b_final


# --------------------------------------------------------------------------- #
# Forward
# --------------------------------------------------------------------------- #
@functools.partial(jax.jit, static_argnames=("hidden_depth", "tile_b"))
def double_q_critic_forward(obs, action, w0_obs, w0_act, w_hidden, w_final,
                            b_hidden, b_final, hidden_depth, tile_b=512):
    assert obs.shape[0] == action.shape[0]
    B = obs.shape[0]
    obs_dim = obs.shape[1]
    action_dim = action.shape[1]
    HP = w0_obs.shape[1]
    OUTP = HP if hidden_depth == 0 else w_final.shape[1]
    n_hidden = max(hidden_depth - 1, 0)

    # Batch tiling: tile is a multiple of 8 (f32 sublane), pad batch if needed.
    tile = _round_up(min(tile_b, _round_up(B, 8)), 8)
    b_pad = _round_up(B, tile)
    if b_pad != B:
        pad = b_pad - B
        obs = jnp.pad(obs, ((0, pad), (0, 0)))
        action = jnp.pad(action, ((0, pad), (0, 0)))

    grid = (b_pad // tile,)

    in_specs = [
        pl.BlockSpec((tile, obs_dim), lambda i: (i, 0)),
        pl.BlockSpec((tile, action_dim), lambda i: (i, 0)),
        pl.BlockSpec(w0_obs.shape, lambda i: (0, 0)),    # grid-invariant weights
        pl.BlockSpec(w0_act.shape, lambda i: (0, 0)),
    ]
    args = [obs, action, w0_obs, w0_act]
    if n_hidden > 0:
        in_specs.append(pl.BlockSpec(w_hidden.shape, lambda i: (0, 0, 0)))
        args.append(w_hidden)
    if hidden_depth >= 1:
        in_specs.append(pl.BlockSpec(w_final.shape, lambda i: (0, 0)))
        args.append(w_final)
    in_specs.append(pl.BlockSpec(b_hidden.shape, lambda i: (0, 0)))
    args.append(b_hidden)
    if hidden_depth >= 1:
        in_specs.append(pl.BlockSpec(b_final.shape, lambda i: (0, 0)))
        args.append(b_final)

    out = pl.pallas_call(
        _make_double_q_kernel(hidden_depth),
        out_shape=jax.ShapeDtypeStruct((b_pad, OUTP), jnp.float32),
        grid=grid,
        in_specs=in_specs,
        out_specs=pl.BlockSpec((tile, OUTP), lambda i: (i, 0)),
        compiler_params=pltpu.CompilerParams(
            dimension_semantics=("parallel",)),
    )(*args)

    # q1 / q2 live in columns 0 / 1 of the lane-dense output slab.
    q1 = out[:B, 0:1]
    q2 = out[:B, 1:2]
    return q1, q2


# --------------------------------------------------------------------------- #
# Pure-JAX reference (un-fused, per-head) for correctness checking
# --------------------------------------------------------------------------- #
def _reference_forward(obs, action, q1_params, q2_params, hidden_depth):
    x = jnp.concatenate([obs, action], axis=-1)
    n_layers = 1 if hidden_depth == 0 else hidden_depth + 1

    def mlp(h, params):
        for i in range(n_layers):
            h = h @ params[2 * i] + params[2 * i + 1]
            if i < n_layers - 1:
                h = jnp.maximum(h, 0.0)
        return h

    return mlp(x, q1_params), mlp(x, q2_params)


if __name__ == "__main__":
    # Small shapes consistent with the module's forward.
    batch = 8
    obs_dim = 24
    action_dim = 8
    hidden_dim = 32
    hidden_depth = 2

    key = jax.random.PRNGKey(0)
    key, k_obs, k_act = jax.random.split(key, 3)
    obs = jax.random.normal(k_obs, (batch, obs_dim), jnp.float32)
    action = jax.random.normal(k_act, (batch, action_dim), jnp.float32)

    q1_params, key = init_mlp_params(key, obs_dim + action_dim, hidden_dim, 1,
                                     hidden_depth)
    q2_params, key = init_mlp_params(key, obs_dim + action_dim, hidden_dim, 1,
                                     hidden_depth)

    # Fuse / pack the two heads into block-diagonal lane-padded slabs.
    # (Use weight_dtype=jnp.bfloat16 on v6e/v7x for halved weight DMA.)
    w0_obs, w0_act, w_hidden, w_final, b_hidden, b_final = pack_double_q_params(
        q1_params, q2_params, obs_dim, action_dim, hidden_dim, hidden_depth,
        weight_dtype=jnp.float32)

    q1, q2 = double_q_critic_forward(obs, action, w0_obs, w0_act, w_hidden,
                                     w_final, b_hidden, b_final,
                                     hidden_depth=hidden_depth, tile_b=512)
    jax.block_until_ready((q1, q2))

    # Sanity-check against the pure-JAX, un-fused reference.
    r1, r2 = _reference_forward(obs, action, q1_params, q2_params, hidden_depth)
    assert q1.shape == (batch, 1) and q2.shape == (batch, 1)
    assert jnp.allclose(q1, r1, atol=1e-4, rtol=1e-4)
    assert jnp.allclose(q2, r2, atol=1e-4, rtol=1e-4)

    # TODO(synk): self.outputs dict (training-time logging side-effect) is not
    # part of the numerical forward pass and is intentionally omitted.
    print("KERNEL_OK")
</pallas_src>

<mosaic_0001>
module attributes {stable_mosaic.version = 11 : i64} {
  func.func @kernel(%arg0: i32, %arg1: memref<8x24xf32, #tpu.memory_space<vmem>>, %arg2: memref<8x8xf32, #tpu.memory_space<vmem>>, %arg3: memref<24x128xf32, #tpu.memory_space<vmem>>, %arg4: memref<8x128xf32, #tpu.memory_space<vmem>>, %arg5: memref<1x128x128xf32, #tpu.memory_space<vmem>>, %arg6: memref<128x128xf32, #tpu.memory_space<vmem>>, %arg7: memref<2x128xf32, #tpu.memory_space<vmem>>, %arg8: memref<1x128xf32, #tpu.memory_space<vmem>>, %arg9: memref<8x128xf32, #tpu.memory_space<vmem>>) attributes {dimension_semantics = [#tpu.dimension_semantics<parallel>], iteration_bounds = array<i64: 1>, scalar_prefetch = 0 : i64, scratch_operands = 0 : i64, tpu.core_type = #tpu.core_type<tc>, window_params = [{transform_indices = @transform_0, window_bounds = array<i64: 8, 24>}, {transform_indices = @transform_1, window_bounds = array<i64: 8, 8>}, {pipeline_mode = #tpu.pipeline_mode<synchronous>, transform_indices = @transform_2, window_bounds = array<i64: 24, 128>}, {pipeline_mode = #tpu.pipeline_mode<synchronous>, transform_indices = @transform_3, window_bounds = array<i64: 8, 128>}, {pipeline_mode = #tpu.pipeline_mode<synchronous>, transform_indices = @transform_4, window_bounds = array<i64: 1, 128, 128>}, {pipeline_mode = #tpu.pipeline_mode<synchronous>, transform_indices = @transform_5, window_bounds = array<i64: 128, 128>}, {pipeline_mode = #tpu.pipeline_mode<synchronous>, transform_indices = @transform_6, window_bounds = array<i64: 2, 128>}, {pipeline_mode = #tpu.pipeline_mode<synchronous>, transform_indices = @transform_7, window_bounds = array<i64: 1, 128>}, {transform_indices = @transform_8, window_bounds = array<i64: 8, 128>}]} {
    %c0 = arith.constant 0 : index
    %c0_0 = arith.constant 0 : index
    %0 = vector.load %arg3[%c0, %c0_0] : memref<24x128xf32, #tpu.memory_space<vmem>>, vector<24x128xf32>
    %c0_1 = arith.constant 0 : index
    %c0_2 = arith.constant 0 : index
    %1 = vector.load %arg4[%c0_1, %c0_2] : memref<8x128xf32, #tpu.memory_space<vmem>>, vector<8x128xf32>
    %c0_3 = arith.constant 0 : index
    %c0_4 = arith.constant 0 : index
    %2 = vector.load %arg1[%c0_3, %c0_4] : memref<8x24xf32, #tpu.memory_space<vmem>>, vector<8x24xf32>
    %cst = arith.constant dense<0.000000e+00> : vector<8x128xf32>
    %3 = tpu.matmul %2, %0, %cst {dimension_numbers = #tpu.dot_dimension_numbers<[1], [0], [0], [1], [0, 0, 1, 1], [], []>} : vector<8x24xf32>, vector<24x128xf32>, vector<8x128xf32> -> vector<8x128xf32>
    %c0_5 = arith.constant 0 : index
    %c0_6 = arith.constant 0 : index
    %4 = vector.load %arg2[%c0_5, %c0_6] : memref<8x8xf32, #tpu.memory_space<vmem>>, vector<8x8xf32>
    %cst_7 = arith.constant dense<0.000000e+00> : vector<8x128xf32>
    %5 = tpu.matmul %4, %1, %cst_7 {dimension_numbers = #tpu.dot_dimension_numbers<[1], [0], [0], [1], [0, 0, 1, 1], [], []>} : vector<8x8xf32>, vector<8x128xf32>, vector<8x128xf32> -> vector<8x128xf32>
    %6 = arith.addf %3, %5 : vector<8x128xf32>
    %c0_8 = arith.constant 0 : index
    %c0_9 = arith.constant 0 : index
    %7 = vector.load %arg7[%c0_8, %c0_9] : memref<2x128xf32, #tpu.memory_space<vmem>>, vector<1x128xf32>
    %8 = vector.broadcast %7 : vector<1x128xf32> to vector<8x128xf32>
    %9 = arith.addf %6, %8 : vector<8x128xf32>
    %cst_10 = arith.constant 0.000000e+00 : f32
    %10 = vector.broadcast %cst_10 : f32 to vector<8x128xf32>
    %11 = arith.maximumf %9, %10 : vector<8x128xf32>
    %c0_11 = arith.constant 0 : index
    %c0_12 = arith.constant 0 : index
    %c0_13 = arith.constant 0 : index
    %12 = vector.load %arg5[%c0_11, %c0_12, %c0_13] : memref<1x128x128xf32, #tpu.memory_space<vmem>>, vector<1x128x128xf32>
    %13 = vector.shape_cast %12 : vector<1x128x128xf32> to vector<128x128xf32>
    %cst_14 = arith.constant dense<0.000000e+00> : vector<8x128xf32>
    %14 = tpu.matmul %11, %13, %cst_14 {dimension_numbers = #tpu.dot_dimension_numbers<[1], [0], [0], [1], [0, 0, 1, 1], [], []>} : vector<8x128xf32>, vector<128x128xf32>, vector<8x128xf32> -> vector<8x128xf32>
    %c1 = arith.constant 1 : index
    %c0_15 = arith.constant 0 : index
    %15 = vector.load %arg7[%c1, %c0_15] : memref<2x128xf32, #tpu.memory_space<vmem>>, vector<1x128xf32>
    %16 = vector.broadcast %15 : vector<1x128xf32> to vector<8x128xf32>
    %17 = arith.addf %14, %16 : vector<8x128xf32>
    %cst_16 = arith.constant 0.000000e+00 : f32
    %18 = vector.broadcast %cst_16 : f32 to vector<8x128xf32>
    %19 = arith.maximumf %17, %18 : vector<8x128xf32>
    %c0_17 = arith.constant 0 : index
    %c0_18 = arith.constant 0 : index
    %20 = vector.load %arg6[%c0_17, %c0_18] : memref<128x128xf32, #tpu.memory_space<vmem>>, vector<128x128xf32>
    %cst_19 = arith.constant dense<0.000000e+00> : vector<8x128xf32>
    %21 = tpu.matmul %19, %20, %cst_19 {dimension_numbers = #tpu.dot_dimension_numbers<[1], [0], [0], [1], [0, 0, 1, 1], [], []>} : vector<8x128xf32>, vector<128x128xf32>, vector<8x128xf32> -> vector<8x128xf32>
    %c0_20 = arith.constant 0 : index
    %c0_21 = arith.constant 0 : index
    %22 = vector.load %arg8[%c0_20, %c0_21] : memref<1x128xf32, #tpu.memory_space<vmem>>, vector<1x128xf32>
    %23 = vector.broadcast %22 : vector<1x128xf32> to vector<8x128xf32>
    %24 = arith.addf %21, %23 : vector<8x128xf32>
    %c0_22 = arith.constant 0 : index
    %c0_23 = arith.constant 0 : index
    %25 = vector.load %arg9[%c0_22, %c0_23] : memref<8x128xf32, #tpu.memory_space<vmem>>, vector<8x128xf32>
    tpu.vector_store %arg9[%c0_22, %c0_23], %24 {strides = array<i32>} : memref<8x128xf32, #tpu.memory_space<vmem>>, vector<8x128xf32>,
    return
  }
  func.func @transform_0(%arg0: i32) -> (i32, i32) {
    %c0_i32 = arith.constant 0 : i32
    %c0_i32_0 = arith.constant 0 : i32
    return %arg0, %c0_i32 : i32, i32
  }
  func.func @transform_1(%arg0: i32) -> (i32, i32) {
    %c0_i32 = arith.constant 0 : i32
    %c0_i32_0 = arith.constant 0 : i32
    return %arg0, %c0_i32 : i32, i32
  }
  func.func @transform_2(%arg0: i32) -> (i32, i32) {
    %c0_i32 = arith.constant 0 : i32
    %c0_i32_0 = arith.constant 0 : i32
    %c0_i32_1 = arith.constant 0 : i32
    return %c0_i32, %c0_i32_0 : i32, i32
  }
  func.func @transform_3(%arg0: i32) -> (i32, i32) {
    %c0_i32 = arith.constant 0 : i32
    %c0_i32_0 = arith.constant 0 : i32
    %c0_i32_1 = arith.constant 0 : i32
    return %c0_i32, %c0_i32_0 : i32, i32
  }
  func.func @transform_4(%arg0: i32) -> (i32, i32, i32) {
    %c0_i32 = arith.constant 0 : i32
    %c0_i32_0 = arith.constant 0 : i32
    %c0_i32_1 = arith.constant 0 : i32
    %c0_i32_2 = arith.constant 0 : i32
    return %c0_i32, %c0_i32_0, %c0_i32_1 : i32, i32, i32
  }
  func.func @transform_5(%arg0: i32) -> (i32, i32) {
    %c0_i32 = arith.constant 0 : i32
    %c0_i32_0 = arith.constant 0 : i32
    %c0_i32_1 = arith.constant 0 : i32
    return %c0_i32, %c0_i32_0 : i32, i32
  }
  func.func @transform_6(%arg0: i32) -> (i32, i32) {
    %c0_i32 = arith.constant 0 : i32
    %c0_i32_0 = arith.constant 0 : i32
    %c0_i32_1 = arith.constant 0 : i32
    return %c0_i32, %c0_i32_0 : i32, i32
  }
  func.func @transform_7(%arg0: i32) -> (i32, i32) {
    %c0_i32 = arith.constant 0 : i32
    %c0_i32_0 = arith.constant 0 : i32
    %c0_i32_1 = arith.constant 0 : i32
    return %c0_i32, %c0_i32_0 : i32, i32
  }
  func.func @transform_8(%arg0: i32) -> (i32, i32) {
    %c0_i32 = arith.constant 0 : i32
    %c0_i32_0 = arith.constant 0 : i32
    return %arg0, %c0_i32 : i32, i32
  }
}

</mosaic_0001>

<llo_original>
// kernel: double_q_critic_forward.1
$region0: #{double_q_critic_forward.1}
  #allocation0 [shape = 'u32[]', space=smem, size = 0x4, offset = 0x4, fixed_abs, tag = 'smem constant byte address 0x4 - core index']
  #allocation1 [shape = 'u32[144,128]{1,0:T(1,128)}', space=vmem, size = 0x12000, scoped, tag = 'internal scratch']
  %s0 = inlined_call_operand.hbm [shape: f32[8,24], index: 0, kind: input, shape index: {}]
  %s1 = inlined_call_operand.hbm [shape: f32[8,8], index: 1, kind: input, shape index: {}]
  %s2 = inlined_call_operand.hbm [shape: f32[24,128], index: 2, kind: input, shape index: {}]
  %s3 = inlined_call_operand.hbm [shape: f32[8,128], index: 3, kind: input, shape index: {}]
  %s4 = inlined_call_operand.hbm [shape: f32[1,128,128], index: 4, kind: input, shape index: {}]
  %s5 = inlined_call_operand.hbm [shape: f32[128,128], index: 5, kind: input, shape index: {}]
  %s6 = inlined_call_operand.vmem [shape: f32[2,128], index: 6, kind: input, shape index: {}]
  %s7 = inlined_call_operand.vmem [shape: f32[1,128], index: 7, kind: input, shape index: {}]
  %s8 = inlined_call_operand.vmem [shape: f32[8,128], index: 8, kind: output, shape index: {}]
  %s9 = sld [smem:[#allocation0]]
  $region66: #{double_q_critic_forward.1} parent=0
    _
  %s11 = ssub.s32 1, %s9
  %s12 = scalar_select 0, %s11, %s9
  $region1: #{double_q_critic_forward.1} parent=0
    #allocation2 [shape = 'u8[4096]{0}', space=vmem, size = 0x1000, scoped, tag = 'input window, operand 0, single buffered']
    #allocation3 [shape = 's32[1]{0}', space=sflag, size = 0x4, scoped, tag = 'scoped memory for double_q_critic_forward.1']
    #allocation4 [shape = 'u8[4096]{0}', space=vmem, size = 0x1000, scoped, tag = 'input window, operand 1, single buffered']
    #allocation5 [shape = 's32[1]{0}', space=sflag, size = 0x4, scoped, tag = 'scoped memory for double_q_critic_forward.1']
    #allocation6 [shape = 'u8[12288]{0}', space=vmem, size = 0x3000, scoped, tag = 'input window, operand 2, single buffered']
    #allocation7 [shape = 'u8[4096]{0}', space=vmem, size = 0x1000, scoped, tag = 'input window, operand 3, single buffered']
    #allocation8 [shape = 's32[1]{0}', space=sflag, size = 0x4, scoped, tag = 'scoped memory for double_q_critic_forward.1']
    #allocation9 [shape = 'u8[65536]{0}', space=vmem, size = 0x10000, scoped, tag = 'input window, operand 4, single buffered']
    #allocation10 [shape = 'u8[65536]{0}', space=vmem, size = 0x10000, scoped, tag = 'input window, operand 5, single buffered']
    #allocation11 [shape = 's32[1]{0}', space=sflag, size = 0x4, scoped, tag = 'scoped memory for double_q_critic_forward.1']
    %13 = vsyncpa [#allocation3], 0
    %14 = vsyncpa [#allocation5], 0
    %15 = vsyncpa [#allocation8], 0
    %16 = vsyncpa [#allocation11], 0
    // Predicated region
    $region2: #{double_q_critic_forward.1} parent=1 // pred_check
      _
    $region3: #{double_q_critic_forward.1} parent=1 // pred_check_branch
      %18 = sbr.rel (0) target = $region5
    $region4: #{double_q_critic_forward.1} parent=1 // pred_region
      %s20 = ssub.s32 128, 128
      %21 = vsyncadd [#allocation3], %s20
      %s23 = sshll.u32 [#allocation2], 4
      %s24 = int_to_ptr.vmem [resolvable:$true] %s23
      %26 = dma.hbm_to_vmem [thread:$0]  %s0, 128, %s24, [#allocation3]
    $region5: #{double_q_critic_forward.1} parent=1 // pred_fallthru
      _
    // Predicated region
    $region6: #{double_q_critic_forward.1} parent=1 // pred_check
      _
    $region7: #{double_q_critic_forward.1} parent=1 // pred_check_branch
      %28 = sbr.rel (0) target = $region9
    $region8: #{double_q_critic_forward.1} parent=1 // pred_region
      %s30 = ssub.s32 128, 128
      %31 = vsyncadd [#allocation5], %s30
      %s33 = sshll.u32 [#allocation4], 4
      %s34 = int_to_ptr.vmem [resolvable:$true] %s33
      %36 = dma.hbm_to_vmem [thread:$0]  %s1, 128, %s34, [#allocation5]
    $region9: #{double_q_critic_forward.1} parent=1 // pred_fallthru
      _
    // Predicated region
    $region10: #{double_q_critic_forward.1} parent=1 // pred_check
      _
    $region11: #{double_q_critic_forward.1} parent=1 // pred_check_branch
      %38 = sbr.rel (0) target = $region13
    $region12: #{double_q_critic_forward.1} parent=1 // pred_region
      %s40 = ssub.s32 384, 384
      %41 = vsyncadd [#allocation5], %s40
      %s42 = sshll.u32 [#allocation6], 4
      %s43 = int_to_ptr.vmem [resolvable:$true] %s42
      %48 = dma.hbm_to_vmem [thread:$0]  %s2, 384, %s43, [#allocation5], 128, 128, 8
    $region13: #{double_q_critic_forward.1} parent=1 // pred_fallthru
      _
    // Predicated region
    $region14: #{double_q_critic_forward.1} parent=1 // pred_check
      _
    $region15: #{double_q_critic_forward.1} parent=1 // pred_check_branch
      %50 = sbr.rel (0) target = $region17
    $region16: #{double_q_critic_forward.1} parent=1 // pred_region
      %s52 = ssub.s32 128, 128
      %53 = vsyncadd [#allocation8], %s52
      %s55 = sshll.u32 [#allocation7], 4
      %s56 = int_to_ptr.vmem [resolvable:$true] %s55
      %58 = dma.hbm_to_vmem [thread:$0]  %s3, 128, %s56, [#allocation8]
    $region17: #{double_q_critic_forward.1} parent=1 // pred_fallthru
      _
    // Predicated region
    $region18: #{double_q_critic_forward.1} parent=1 // pred_check
      _
    $region19: #{double_q_critic_forward.1} parent=1 // pred_check_branch
      %60 = sbr.rel (0) target = $region21
    $region20: #{double_q_critic_forward.1} parent=1 // pred_region
      %s62 = ssub.s32 2048, 2048
      %63 = vsyncadd [#allocation8], %s62
      %s64 = sshll.u32 [#allocation9], 4
      %s65 = int_to_ptr.vmem [resolvable:$true] %s64
      %70 = dma.hbm_to_vmem [thread:$0]  %s4, 2048, %s65, [#allocation8], 128, 128, 8
    $region21: #{double_q_critic_forward.1} parent=1 // pred_fallthru
      _
    // Predicated region
    $region22: #{double_q_critic_forward.1} parent=1 // pred_check
      _
    $region23: #{double_q_critic_forward.1} parent=1 // pred_check_branch
      %72 = sbr.rel (0) target = $region25
    $region24: #{double_q_critic_forward.1} parent=1 // pred_region
      %s74 = ssub.s32 2048, 2048
      %75 = vsyncadd [#allocation11], %s74
      %s76 = sshll.u32 [#allocation10], 4
      %s77 = int_to_ptr.vmem [resolvable:$true] %s76
      %82 = dma.hbm_to_vmem [thread:$0]  %s5, 2048, %s77, [#allocation11], 128, 128, 8
    $region25: #{double_q_critic_forward.1} parent=1 // pred_fallthru
      _
    // Predicated region
    $region26: #{double_q_critic_forward.1} parent=1 // pred_check
      _
    $region27: #{double_q_critic_forward.1} parent=1 // pred_check_branch
      %84 = sbr.rel (0) target = $region29
    $region28: #{double_q_critic_forward.1} parent=1 // pred_region
      _
    $region29: #{double_q_critic_forward.1} parent=1 // pred_fallthru
      _
    // Predicated region
    $region30: #{double_q_critic_forward.1} parent=1 // pred_check
      _
    $region31: #{double_q_critic_forward.1} parent=1 // pred_check_branch
      %86 = sbr.rel (0) target = $region33
    $region32: #{double_q_critic_forward.1} parent=1 // pred_region
      _
    $region33: #{double_q_critic_forward.1} parent=1 // pred_fallthru
      _
    // Predicated region
    $region34: #{double_q_critic_forward.1} parent=1 // pred_check
      _
    $region35: #{double_q_critic_forward.1} parent=1 // pred_check_branch
      %88 = sbr.rel (0) target = $region37
    $region36: #{double_q_critic_forward.1} parent=1 // pred_region
      %89 = dma.done [#allocation3], 128
    $region37: #{double_q_critic_forward.1} parent=1 // pred_fallthru
      _
    // Predicated region
    $region38: #{double_q_critic_forward.1} parent=1 // pred_check
      _
    $region39: #{double_q_critic_forward.1} parent=1 // pred_check_branch
      %91 = sbr.rel (0) target = $region41
    $region40: #{double_q_critic_forward.1} parent=1 // pred_region
      %92 = dma.done [#allocation5], 128
    $region41: #{double_q_critic_forward.1} parent=1 // pred_fallthru
      _
    // Predicated region
    $region42: #{double_q_critic_forward.1} parent=1 // pred_check
      _
    $region43: #{double_q_critic_forward.1} parent=1 // pred_check_branch
      %94 = sbr.rel (0) target = $region45
    $region44: #{double_q_critic_forward.1} parent=1 // pred_region
      %95 = dma.done [#allocation5], 384
    $region45: #{double_q_critic_forward.1} parent=1 // pred_fallthru
      _
    // Predicated region
    $region46: #{double_q_critic_forward.1} parent=1 // pred_check
      _
    $region47: #{double_q_critic_forward.1} parent=1 // pred_check_branch
      %97 = sbr.rel (0) target = $region49
    $region48: #{double_q_critic_forward.1} parent=1 // pred_region
      %98 = dma.done [#allocation8], 128
    $region49: #{double_q_critic_forward.1} parent=1 // pred_fallthru
      _
    // Predicated region
    $region50: #{double_q_critic_forward.1} parent=1 // pred_check
      _
    $region51: #{double_q_critic_forward.1} parent=1 // pred_check_branch
      %100 = sbr.rel (0) target = $region53
    $region52: #{double_q_critic_forward.1} parent=1 // pred_region
      %101 = dma.done [#allocation8], 2048
    $region53: #{double_q_critic_forward.1} parent=1 // pred_fallthru
      _
    // Predicated region
    $region54: #{double_q_critic_forward.1} parent=1 // pred_check
      _
    $region55: #{double_q_critic_forward.1} parent=1 // pred_check_branch
      %103 = sbr.rel (0) target = $region57
    $region56: #{double_q_critic_forward.1} parent=1 // pred_region
      %104 = dma.done [#allocation11], 2048
    $region57: #{double_q_critic_forward.1} parent=1 // pred_fallthru
      _
    %v105 = vld [vmem:[#allocation6] sm:$0xff]
    %v106 = vld [vmem:[#allocation6 + $0x8] sm:$0xff]
    %v107 = vld [vmem:[#allocation6 + $0x10] sm:$0xff]
    %v108 = vld [vmem:[#allocation7] sm:$0xff]
    %v109 = vld [vmem:[#allocation2] sm:$0xff]
    %v110 = vld [vmem:[#allocation4] sm:$0xff]
    %vm111 = vcmask 64512
    %v113 = vsel %vm111, %v110, 0
    %115 = vmatprep.subr.mxu0 0.0
    %116 = vmatpush1.msra.mxu0 0.0
    %117 = vmatprep.subr.mxu0 0.0
    %118 = vmatpush1.msra.mxu0 0.0
    %119 = vmatprep.subr.mxu0 0.0
    %120 = vmatpush1.msra.mxu0 0.0
    %121 = vmatprep.subr.mxu0 0.0
    %122 = vmatpush1.msra.mxu0 0.0
    %123 = vmatprep.subr.mxu0 0.0
    %124 = vmatpush1.msra.mxu0 0.0
    %125 = vmatprep.subr.mxu0 0.0
    %126 = vmatpush1.msra.mxu0 0.0
    %127 = vmatprep.subr.mxu0 0.0
    %128 = vmatpush1.msra.mxu0 0.0
    %129 = vmatprep.subr.mxu0 0.0
    %130 = vmatpush1.msra.mxu0 0.0
    %131 = vmatprep.subr.mxu0 0.0
    %132 = vmatpush1.msra.mxu0 0.0
    %133 = vmatprep.subr.mxu0 0.0
    %134 = vmatpush1.msra.mxu0 0.0
    %135 = vmatprep.subr.mxu0 0.0
    %136 = vmatpush1.msra.mxu0 0.0
    %137 = vmatprep.subr.mxu0 0.0
    %138 = vmatpush1.msra.mxu0 0.0
    %139 = vmatprep.subr.mxu0 0.0
    %140 = vmatpush1.msra.mxu0 0.0
    %141 = vmatprep.subr.mxu0 0.0
    %142 = vmatpush1.msra.mxu0 0.0
    %143 = vmatprep.subr.mxu0 0.0
    %144 = vmatpush1.msra.mxu0 0.0
    %145 = vmatprep.subr.mxu0 0.0
    %146 = vmatpush1.msra.mxu0 %v108
    %147 = vmatprep.subr.mxu0 0.0
    %148 = vmatpush2.msra.mxu0 0.0
    %149 = vmatprep.subr.mxu0 0.0
    %150 = vmatpush2.msra.mxu0 0.0
    %151 = vmatprep.subr.mxu0 0.0
    %152 = vmatpush2.msra.mxu0 0.0
    %153 = vmatprep.subr.mxu0 0.0
    %154 = vmatpush2.msra.mxu0 0.0
    %155 = vmatprep.subr.mxu0 0.0
    %156 = vmatpush2.msra.mxu0 0.0
    %157 = vmatprep.subr.mxu0 0.0
    %158 = vmatpush2.msra.mxu0 0.0
    %159 = vmatprep.subr.mxu0 0.0
    %160 = vmatpush2.msra.mxu0 0.0
    %161 = vmatprep.subr.mxu0 0.0
    %162 = vmatpush2.msra.mxu0 0.0
    %163 = vmatprep.subr.mxu0 0.0
    %164 = vmatpush2.msra.mxu0 0.0
    %165 = vmatprep.subr.mxu0 0.0
    %166 = vmatpush2.msra.mxu0 0.0
    %167 = vmatprep.subr.mxu0 0.0
    %168 = vmatpush2.msra.mxu0 0.0
    %169 = vmatprep.subr.mxu0 0.0
    %170 = vmatpush2.msra.mxu0 0.0
    %171 = vmatprep.subr.mxu0 0.0
    %172 = vmatpush2.msra.mxu0 0.0
    %173 = vmatprep.subr.mxu0 0.0
    %174 = vmatpush2.msra.mxu0 0.0
    %175 = vmatprep.subr.mxu0 0.0
    %176 = vmatpush2.msra.mxu0 0.0
    %177 = vmatprep.subr.mxu0 0.0
    %178 = vmatpush2.msra.mxu0 0.0
    %179 = vmatprep.mubr.f32.mxu0 0.0
    %180 = vmatmul.mubr.f32.gmra.mxu0 %v113
    %v181 = vpop.f32.mrf.mxu0
    %v182 = vadd.f32 0.0, %v181
    %v183 = vpop.f32.mrf.mxu0
    %184 = vdwg.mxu0
    %vm185 = vcmask 195584
    %v187 = vsel %vm185, %v109, 0
    %189 = vmatprep.subr.mxu0 0.0
    %190 = vmatpush1.msra.mxu0 0.0
    %191 = vmatprep.subr.mxu0 0.0
    %192 = vmatpush1.msra.mxu0 0.0
    %193 = vmatprep.subr.mxu0 0.0
    %194 = vmatpush1.msra.mxu0 0.0
    %195 = vmatprep.subr.mxu0 0.0
    %196 = vmatpush1.msra.mxu0 0.0
    %197 = vmatprep.subr.mxu0 0.0
    %198 = vmatpush1.msra.mxu0 0.0
    %199 = vmatprep.subr.mxu0 0.0
    %200 = vmatpush1.msra.mxu0 0.0
    %201 = vmatprep.subr.mxu0 0.0
    %202 = vmatpush1.msra.mxu0 0.0
    %203 = vmatprep.subr.mxu0 0.0
    %204 = vmatpush1.msra.mxu0 0.0
    %205 = vmatprep.subr.mxu0 0.0
    %206 = vmatpush1.msra.mxu0 0.0
    %207 = vmatprep.subr.mxu0 0.0
    %208 = vmatpush1.msra.mxu0 0.0
    %209 = vmatprep.subr.mxu0 0.0
    %210 = vmatpush1.msra.mxu0 0.0
    %211 = vmatprep.subr.mxu0 0.0
    %212 = vmatpush1.msra.mxu0 0.0
    %213 = vmatprep.subr.mxu0 0.0
    %214 = vmatpush1.msra.mxu0 0.0
    %215 = vmatprep.subr.mxu0 0.0
    %216 = vmatpush1.msra.mxu0 %v107
    %217 = vmatprep.subr.mxu0 0.0
    %218 = vmatpush1.msra.mxu0 %v106
    %219 = vmatprep.subr.mxu0 0.0
    %220 = vmatpush1.msra.mxu0 %v105
    %221 = vmatprep.subr.mxu0 0.0
    %222 = vmatpush2.msra.mxu0 0.0
    %223 = vmatprep.subr.mxu0 0.0
    %224 = vmatpush2.msra.mxu0 0.0
    %225 = vmatprep.subr.mxu0 0.0
    %226 = vmatpush2.msra.mxu0 0.0
    %227 = vmatprep.subr.mxu0 0.0
    %228 = vmatpush2.msra.mxu0 0.0
    %229 = vmatprep.subr.mxu0 0.0
    %230 = vmatpush2.msra.mxu0 0.0
    %231 = vmatprep.subr.mxu0 0.0
    %232 = vmatpush2.msra.mxu0 0.0
    %233 = vmatprep.subr.mxu0 0.0
    %234 = vmatpush2.msra.mxu0 0.0
    %235 = vmatprep.subr.mxu0 0.0
    %236 = vmatpush2.msra.mxu0 0.0
    %237 = vmatprep.subr.mxu0 0.0
    %238 = vmatpush2.msra.mxu0 0.0
    %239 = vmatprep.subr.mxu0 0.0
    %240 = vmatpush2.msra.mxu0 0.0
    %241 = vmatprep.subr.mxu0 0.0
    %242 = vmatpush2.msra.mxu0 0.0
    %243 = vmatprep.subr.mxu0 0.0
    %244 = vmatpush2.msra.mxu0 0.0
    %245 = vmatprep.subr.mxu0 0.0
    %246 = vmatpush2.msra.mxu0 0.0
    %247 = vmatprep.subr.mxu0 0.0
    %248 = vmatpush2.msra.mxu0 0.0
    %249 = vmatprep.subr.mxu0 0.0
    %250 = vmatpush2.msra.mxu0 0.0
    %251 = vmatprep.subr.mxu0 0.0
    %252 = vmatpush2.msra.mxu0 0.0
    %253 = vmatprep.mubr.f32.mxu0 0.0
    %254 = vmatmul.mubr.f32.gmra.mxu0 %v187
    %v255 = vpop.f32.mrf.mxu0
    %v256 = vadd.f32 %v182, %v255
    %v257 = vpop.f32.mrf.mxu0
    %258 = vdwg.mxu0
    %v259 = vld [vmem:[%s6] sm:$0x1]
    %v260 = vlaneseq
    %v261 = vshrl.u32 %v260, 7
    %v262 = vsub.s32 0, %v261
    %v263 = vrot.slane %v259, %v262
    %v264 = vadd.f32 %v256, %v263
    %v265 = vmax.f32 %v264, 0.0
    %v266 = vld [vmem:[#allocation9] sm:$0xff]
    %v267 = vld [vmem:[#allocation9 + $0x8] sm:$0xff]
    %v268 = vld [vmem:[#allocation9 + $0x10] sm:$0xff]
    %v269 = vld [vmem:[#allocation9 + $0x18] sm:$0xff]
    %v270 = vld [vmem:[#allocation9 + $0x20] sm:$0xff]
    %v271 = vld [vmem:[#allocation9 + $0x28] sm:$0xff]
    %v272 = vld [vmem:[#allocation9 + $0x30] sm:$0xff]
    %v273 = vld [vmem:[#allocation9 + $0x38] sm:$0xff]
    %v274 = vld [vmem:[#allocation9 + $0x40] sm:$0xff]
    %v275 = vld [vmem:[#allocation9 + $0x48] sm:$0xff]
    %v276 = vld [vmem:[#allocation9 + $0x50] sm:$0xff]
    %v277 = vld [vmem:[#allocation9 + $0x58] sm:$0xff]
    %v278 = vld [vmem:[#allocation9 + $0x60] sm:$0xff]
    %v279 = vld [vmem:[#allocation9 + $0x68] sm:$0xff]
    %v280 = vld [vmem:[#allocation9 + $0x70] sm:$0xff]
    %v281 = vld [vmem:[#allocation9 + $0x78] sm:$0xff]
    %v282 = vld [vmem:[%s6 + $0x1] sm:$0x1]
    %v283 = vlaneseq
    %v284 = vshrl.u32 %v283, 7
    %v285 = vsub.s32 0, %v284
    %v286 = vrot.slane %v282, %v285
    %287 = vmatprep.subr.mxu0 0.0
    %288 = vmatpush1.msra.mxu0 %v281
    %289 = vmatprep.subr.mxu0 0.0
    %290 = vmatpush1.msra.mxu0 %v280
    %291 = vmatprep.subr.mxu0 0.0
    %292 = vmatpush1.msra.mxu0 %v279
    %293 = vmatprep.subr.mxu0 0.0
    %294 = vmatpush1.msra.mxu0 %v278
    %295 = vmatprep.subr.mxu0 0.0
    %296 = vmatpush1.msra.mxu0 %v277
    %297 = vmatprep.subr.mxu0 0.0
    %298 = vmatpush1.msra.mxu0 %v276
    %299 = vmatprep.subr.mxu0 0.0
    %300 = vmatpush1.msra.mxu0 %v275
    %301 = vmatprep.subr.mxu0 0.0
    %302 = vmatpush1.msra.mxu0 %v274
    %303 = vmatprep.subr.mxu0 0.0
    %304 = vmatpush1.msra.mxu0 %v273
    %305 = vmatprep.subr.mxu0 0.0
    %306 = vmatpush1.msra.mxu0 %v272
    %307 = vmatprep.subr.mxu0 0.0
    %308 = vmatpush1.msra.mxu0 %v271
    %309 = vmatprep.subr.mxu0 0.0
    %310 = vmatpush1.msra.mxu0 %v270
    %311 = vmatprep.subr.mxu0 0.0
    %312 = vmatpush1.msra.mxu0 %v269
    %313 = vmatprep.subr.mxu0 0.0
    %314 = vmatpush1.msra.mxu0 %v268
    %315 = vmatprep.subr.mxu0 0.0
    %316 = vmatpush1.msra.mxu0 %v267
    %317 = vmatprep.subr.mxu0 0.0
    %318 = vmatpush1.msra.mxu0 %v266
    %319 = vmatprep.subr.mxu0 0.0
    %320 = vmatpush2.msra.mxu0 0.0
    %321 = vmatprep.subr.mxu0 0.0
    %322 = vmatpush2.msra.mxu0 0.0
    %323 = vmatprep.subr.mxu0 0.0
    %324 = vmatpush2.msra.mxu0 0.0
    %325 = vmatprep.subr.mxu0 0.0
    %326 = vmatpush2.msra.mxu0 0.0
    %327 = vmatprep.subr.mxu0 0.0
    %328 = vmatpush2.msra.mxu0 0.0
    %329 = vmatprep.subr.mxu0 0.0
    %330 = vmatpush2.msra.mxu0 0.0
    %331 = vmatprep.subr.mxu0 0.0
    %332 = vmatpush2.msra.mxu0 0.0
    %333 = vmatprep.subr.mxu0 0.0
    %334 = vmatpush2.msra.mxu0 0.0
    %335 = vmatprep.subr.mxu0 0.0
    %336 = vmatpush2.msra.mxu0 0.0
    %337 = vmatprep.subr.mxu0 0.0
    %338 = vmatpush2.msra.mxu0 0.0
    %339 = vmatprep.subr.mxu0 0.0
    %340 = vmatpush2.msra.mxu0 0.0
    %341 = vmatprep.subr.mxu0 0.0
    %342 = vmatpush2.msra.mxu0 0.0
    %343 = vmatprep.subr.mxu0 0.0
    %344 = vmatpush2.msra.mxu0 0.0
    %345 = vmatprep.subr.mxu0 0.0
    %346 = vmatpush2.msra.mxu0 0.0
    %347 = vmatprep.subr.mxu0 0.0
    %348 = vmatpush2.msra.mxu0 0.0
    %349 = vmatprep.subr.mxu0 0.0
    %350 = vmatpush2.msra.mxu0 0.0
    %351 = vmatprep.mubr.f32.mxu0 0.0
    %352 = vmatmul.mubr.f32.gmra.mxu0 %v265
    %v353 = vpop.f32.mrf.mxu0
    %v354 = vadd.f32 %v286, %v353
    %v355 = vpop.f32.mrf.mxu0
    %356 = vdwg.mxu0
    %v357 = vmax.f32 %v354, 0.0
    %v358 = vld [vmem:[#allocation10] sm:$0xff]
    %v359 = vld [vmem:[#allocation10 + $0x8] sm:$0xff]
    %v360 = vld [vmem:[#allocation10 + $0x10] sm:$0xff]
    %v361 = vld [vmem:[#allocation10 + $0x18] sm:$0xff]
    %v362 = vld [vmem:[#allocation10 + $0x20] sm:$0xff]
    %v363 = vld [vmem:[#allocation10 + $0x28] sm:$0xff]
    %v364 = vld [vmem:[#allocation10 + $0x30] sm:$0xff]
    %v365 = vld [vmem:[#allocation10 + $0x38] sm:$0xff]
    %v366 = vld [vmem:[#allocation10 + $0x40] sm:$0xff]
    %v367 = vld [vmem:[#allocation10 + $0x48] sm:$0xff]
    %v368 = vld [vmem:[#allocation10 + $0x50] sm:$0xff]
    %v369 = vld [vmem:[#allocation10 + $0x58] sm:$0xff]
    %v370 = vld [vmem:[#allocation10 + $0x60] sm:$0xff]
    %v371 = vld [vmem:[#allocation10 + $0x68] sm:$0xff]
    %v372 = vld [vmem:[#allocation10 + $0x70] sm:$0xff]
    %v373 = vld [vmem:[#allocation10 + $0x78] sm:$0xff]
    %v374 = vld [vmem:[%s7] sm:$0x1]
    %v376 = vlaneseq
    %v377 = vshrl.u32 %v376, 7
    %v378 = vsub.s32 0, %v377
    %v379 = vrot.slane %v374, %v378
    %381 = vmatprep.subr.mxu0 0.0
    %382 = vmatpush1.msra.mxu0 %v373
    %383 = vmatprep.subr.mxu0 0.0
    %384 = vmatpush1.msra.mxu0 %v372
    %385 = vmatprep.subr.mxu0 0.0
    %386 = vmatpush1.msra.mxu0 %v371
    %387 = vmatprep.subr.mxu0 0.0
    %388 = vmatpush1.msra.mxu0 %v370
    %389 = vmatprep.subr.mxu0 0.0
    %390 = vmatpush1.msra.mxu0 %v369
    %391 = vmatprep.subr.mxu0 0.0
    %392 = vmatpush1.msra.mxu0 %v368
    %393 = vmatprep.subr.mxu0 0.0
    %394 = vmatpush1.msra.mxu0 %v367
    %395 = vmatprep.subr.mxu0 0.0
    %396 = vmatpush1.msra.mxu0 %v366
    %397 = vmatprep.subr.mxu0 0.0
    %398 = vmatpush1.msra.mxu0 %v365
    %399 = vmatprep.subr.mxu0 0.0
    %400 = vmatpush1.msra.mxu0 %v364
    %401 = vmatprep.subr.mxu0 0.0
    %402 = vmatpush1.msra.mxu0 %v363
    %403 = vmatprep.subr.mxu0 0.0
    %404 = vmatpush1.msra.mxu0 %v362
    %405 = vmatprep.subr.mxu0 0.0
    %406 = vmatpush1.msra.mxu0 %v361
    %407 = vmatprep.subr.mxu0 0.0
    %408 = vmatpush1.msra.mxu0 %v360
    %409 = vmatprep.subr.mxu0 0.0
    %410 = vmatpush1.msra.mxu0 %v359
    %411 = vmatprep.subr.mxu0 0.0
    %412 = vmatpush1.msra.mxu0 %v358
    %413 = vmatprep.subr.mxu0 0.0
    %414 = vmatpush2.msra.mxu0 0.0
    %415 = vmatprep.subr.mxu0 0.0
    %416 = vmatpush2.msra.mxu0 0.0
    %417 = vmatprep.subr.mxu0 0.0
    %418 = vmatpush2.msra.mxu0 0.0
    %419 = vmatprep.subr.mxu0 0.0
    %420 = vmatpush2.msra.mxu0 0.0
    %421 = vmatprep.subr.mxu0 0.0
    %422 = vmatpush2.msra.mxu0 0.0
    %423 = vmatprep.subr.mxu0 0.0
    %424 = vmatpush2.msra.mxu0 0.0
    %425 = vmatprep.subr.mxu0 0.0
    %426 = vmatpush2.msra.mxu0 0.0
    %427 = vmatprep.subr.mxu0 0.0
    %428 = vmatpush2.msra.mxu0 0.0
    %429 = vmatprep.subr.mxu0 0.0
    %430 = vmatpush2.msra.mxu0 0.0
    %431 = vmatprep.subr.mxu0 0.0
    %432 = vmatpush2.msra.mxu0 0.0
    %433 = vmatprep.subr.mxu0 0.0
    %434 = vmatpush2.msra.mxu0 0.0
    %435 = vmatprep.subr.mxu0 0.0
    %436 = vmatpush2.msra.mxu0 0.0
    %437 = vmatprep.subr.mxu0 0.0
    %438 = vmatpush2.msra.mxu0 0.0
    %439 = vmatprep.subr.mxu0 0.0
    %440 = vmatpush2.msra.mxu0 0.0
    %441 = vmatprep.subr.mxu0 0.0
    %442 = vmatpush2.msra.mxu0 0.0
    %443 = vmatprep.subr.mxu0 0.0
    %444 = vmatpush2.msra.mxu0 0.0
    %445 = vmatprep.mubr.f32.mxu0 0.0
    %446 = vmatmul.mubr.f32.gmra.mxu0 %v357
    %v447 = vpop.f32.mrf.mxu0
    %v448 = vadd.f32 %v379, %v447
    %v449 = vpop.f32.mrf.mxu0
    %450 = vdwg.mxu0
    %451 = vst [vmem:[%s8] sm:$0xff] %v448
    // Predicated region
    $region58: #{double_q_critic_forward.1} parent=1 // pred_check
      _
    $region59: #{double_q_critic_forward.1} parent=1 // pred_check_branch
      %453 = sbr.rel (0) target = $region61
    $region60: #{double_q_critic_forward.1} parent=1 // pred_region
      _
    $region61: #{double_q_critic_forward.1} parent=1 // pred_fallthru
      _
    // Predicated region
    $region62: #{double_q_critic_forward.1} parent=1 // pred_check
      _
    $region63: #{double_q_critic_forward.1} parent=1 // pred_check_branch
      %455 = sbr.rel (0) target = $region65
    $region64: #{double_q_critic_forward.1} parent=1 // pred_region
      _
    $region65: #{double_q_critic_forward.1} parent=1 // pred_fallthru
      _
    %456 = vsyncpa [#allocation3], 1
    %457 = vsyncpa [#allocation5], 1
    %458 = vsyncpa [#allocation8], 1
    %459 = vsyncpa [#allocation11], 1

</llo_original>
